<compile_context>
chip_gen: v5e
topology: v5e:2x2
jax: 0.10.0
libtpu: 0.0.40
codegen_flags: <defaults>
</compile_context>

<pallas_src>
import math

import jax
import jax.numpy as jnp
import numpy as np
from jax.experimental import pallas as pl
from jax.experimental.pallas import tpu as pltpu


def _layer_norm(x, gamma, beta, eps=1e-5):
    # PyTorch nn.LayerNorm: biased variance over the last dim.
    mu = jnp.mean(x, axis=-1, keepdims=True)
    var = jnp.mean((x - mu) ** 2, axis=-1, keepdims=True)
    return (x - mu) * jax.lax.rsqrt(var + eps) * gamma + beta


def pt_block_kernel(x_ref,
                    wqkv_ref, bqkv_ref, wo_ref, bo_ref,
                    ln_a_g_ref, ln_a_b_ref,
                    w1_ref, b1_ref, w2_ref, b2_ref,
                    ln_f_g_ref, ln_f_b_ref,
                    o_ref):
    b_blk, s, e = x_ref.shape
    r = b_blk * s
    cd = wqkv_ref.dtype                       # MXU input ("compute") dtype

    # Small params as 2-D (1, N) values; broadcasting against (r, N) is free.
    bqkv = bqkv_ref[...]
    bo = bo_ref[...]
    ln_a_g, ln_a_b = ln_a_g_ref[...], ln_a_b_ref[...]
    b1, b2 = b1_ref[...], b2_ref[...]
    ln_f_g, ln_f_b = ln_f_g_ref[...], ln_f_b_ref[...]

    # (B_blk, S, E) -> (B_blk*S, E): leading-dim collapse only (layout-free,
    # S is a multiple of 8 or B_blk == 1 by construction in the wrapper).
    x = x_ref[...].reshape(r, e)

    # -------- attention branch: temp = x + MSA(ln_attn(x)) -------------------
    h = _layer_norm(x, ln_a_g, ln_a_b)
    # Fused QKV projection: one MXU push with N = 3E.
    qkv = jnp.dot(h.astype(cd), wqkv_ref[...],
                  preferred_element_type=jnp.float32) + bqkv
    q = qkv[:, :e].reshape(b_blk, s, e).astype(cd)
    k = qkv[:, e:2 * e].reshape(b_blk, s, e).astype(cd)
    v = qkv[:, 2 * e:].reshape(b_blk, s, e).astype(cd)

    scale = 1.0 / math.sqrt(e)
    # Batched score matmul contracting the last dims directly (no k.T copy).
    logits = jnp.einsum("bqe,bke->bqk", q, k,
                        preferred_element_type=jnp.float32) * scale
    logits = logits - jnp.max(logits, axis=-1, keepdims=True)
    p = jnp.exp(logits)
    # Reciprocal-multiply: keeps the normalization off the VALU divide path.
    p = p * pl.reciprocal(jnp.sum(p, axis=-1, keepdims=True), approx=False)
    ctx = jnp.einsum("bqk,bke->bqe", p.astype(cd), v,
                     preferred_element_type=jnp.float32)
    ctx = ctx.reshape(r, e)
    attn_out = jnp.dot(ctx.astype(cd), wo_ref[...],
                       preferred_element_type=jnp.float32) + bo
    temp = x + attn_out

    # -------- FFN branch: out = temp + ffn2(relu(ffn1(ln_ffn(temp)))) --------
    h2 = _layer_norm(temp, ln_f_g, ln_f_b)
    f1 = jnp.dot(h2.astype(cd), w1_ref[...],
                 preferred_element_type=jnp.float32) + b1
    f1 = jnp.maximum(f1, 0.0)
    f2 = jnp.dot(f1.astype(cd), w2_ref[...],
                 preferred_element_type=jnp.float32) + b2

    # Leading-dim split only (layout-free).  With E < 128 this store is
    # lane-masked; at production shapes (E % 128 == 0) it is lane-dense.
    o_ref[...] = (temp + f2).reshape(b_blk, s, e)


def _choose_batch_block(B, S, target_rows=256):
    """Largest divisor of B whose row tile (B_blk*S) stays near target_rows."""
    if S % 8 != 0:
        # Keep per-batch blocks so the in-kernel leading-dim reshape stays a
        # pure layout-preserving collapse.
        return 1
    divs = [d for d in range(1, B + 1) if B % d == 0]
    fitting = [d for d in divs if d * S <= max(target_rows, S)] or [1]
    return max(fitting)


def pt_block(x, params, compute_dtype=jnp.float32):
    """Run the fused transformer block kernel. x: (B, S, E) float32."""
    B, S, E = x.shape
    H = params["w1"].shape[1]                               # E * 4

    # Pack Q/K/V weights and biases once in the wrapper.
    wqkv = jnp.concatenate([params["wq"], params["wk"], params["wv"]], axis=1)
    bqkv = jnp.concatenate([params["bq"], params["bk"], params["bv"]], axis=1)
    wo, w1, w2 = params["wo"], params["w1"], params["w2"]
    if compute_dtype != jnp.float32:
        # Halve weight VMEM/HBM traffic; matmuls accumulate in f32.
        wqkv, wo, w1, w2 = (a.astype(compute_dtype) for a in (wqkv, wo, w1, w2))

    B_blk = _choose_batch_block(B, S)
    grid = (B // B_blk,)

    def const_spec(a):
        assert a.ndim == 2
        return pl.BlockSpec(a.shape, lambda b: (0, 0))

    in_specs = [
        pl.BlockSpec((B_blk, S, E), lambda b: (b, 0, 0)),   # x (row tile)
        const_spec(wqkv), const_spec(bqkv),                 # fused QKV
        const_spec(wo), const_spec(params["bo"]),           # output proj
        const_spec(params["ln_attn_g"]), const_spec(params["ln_attn_b"]),
        const_spec(w1), const_spec(params["b1"]),           # ffn1
        const_spec(w2), const_spec(params["b2"]),           # ffn2
        const_spec(params["ln_ffn_g"]), const_spec(params["ln_ffn_b"]),
    ]

    # Advisory cost estimate for XLA's scheduler.
    flops = 2 * B * S * (3 * E * E + E * E + 2 * E * H) + 4 * B * S * S * E
    transcendentals = B * S * S                              # softmax exp
    weight_args = (wqkv, bqkv, wo, params["bo"], w1, params["b1"],
                   w2, params["b2"], params["ln_attn_g"], params["ln_attn_b"],
                   params["ln_ffn_g"], params["ln_ffn_b"])
    w_bytes = sum(int(a.size) * a.dtype.itemsize for a in weight_args)
    bytes_accessed = 2 * int(x.size) * x.dtype.itemsize + w_bytes
    cost = pl.CostEstimate(flops=flops, transcendentals=transcendentals,
                           bytes_accessed=bytes_accessed)

    # Explicit VMEM budget with headroom; clamp to 64 MiB so the same setting
    # stays valid on v7x (64 MiB physical) as well as v5e/v6e (128 MiB).
    act_bytes = B_blk * S * (2 * E + 3 * E + E + H + S) * 4
    vmem_limit = int(min(64 * 2 ** 20,
                         max(16 * 2 ** 20, 4 * (w_bytes + act_bytes))))

    return pl.pallas_call(
        pt_block_kernel,
        out_shape=jax.ShapeDtypeStruct((B, S, E), jnp.float32),
        grid_spec=pltpu.PrefetchScalarGridSpec(
            num_scalar_prefetch=0,
            grid=grid,
            in_specs=in_specs,
            out_specs=pl.BlockSpec((B_blk, S, E), lambda b: (b, 0, 0)),
        ),
        compiler_params=pltpu.CompilerParams(
            dimension_semantics=("parallel",),
            vmem_limit_bytes=vmem_limit),
        cost_estimate=cost,
    )(
        x, wqkv, bqkv, wo, params["bo"],
        params["ln_attn_g"], params["ln_attn_b"],
        w1, params["b1"], w2, params["b2"],
        params["ln_ffn_g"], params["ln_ffn_b"],
    )


def pt_block_ref(x, p):
    """Plain-JAX reference mirroring PTBlock.forward (for validation)."""
    def ln(v, g, b):
        mu = jnp.mean(v, axis=-1, keepdims=True)
        var = jnp.mean((v - mu) ** 2, axis=-1, keepdims=True)
        return (v - mu) / jnp.sqrt(var + 1e-5) * g + b

    h = ln(x, p["ln_attn_g"][0], p["ln_attn_b"][0])
    q = h @ p["wq"] + p["bq"][0]
    k = h @ p["wk"] + p["bk"][0]
    v = h @ p["wv"] + p["bv"][0]
    attn = jnp.einsum("bqe,bke->bqk", q, k) / math.sqrt(k.shape[-1])
    scores = jax.nn.softmax(attn, axis=-1)
    attn_out = jnp.einsum("bqk,bke->bqe", scores, v) @ p["wo"] + p["bo"][0]
    temp = x + attn_out
    h2 = ln(temp, p["ln_ffn_g"][0], p["ln_ffn_b"][0])
    f = jnp.maximum(h2 @ p["w1"] + p["b1"][0], 0.0) @ p["w2"] + p["b2"][0]
    return temp + f


def init_params(key, E):
    H = E * 4
    ks = jax.random.split(key, 12)
    s_e = 1.0 / math.sqrt(E)
    s_h = 1.0 / math.sqrt(H)
    return {
        "wq": jax.random.uniform(ks[0], (E, E), jnp.float32, -s_e, s_e),
        "bq": jax.random.uniform(ks[1], (1, E), jnp.float32, -s_e, s_e),
        "wk": jax.random.uniform(ks[2], (E, E), jnp.float32, -s_e, s_e),
        "bk": jax.random.uniform(ks[3], (1, E), jnp.float32, -s_e, s_e),
        "wv": jax.random.uniform(ks[4], (E, E), jnp.float32, -s_e, s_e),
        "bv": jax.random.uniform(ks[5], (1, E), jnp.float32, -s_e, s_e),
        "wo": jax.random.uniform(ks[6], (E, E), jnp.float32, -s_e, s_e),
        "bo": jax.random.uniform(ks[7], (1, E), jnp.float32, -s_e, s_e),
        "ln_attn_g": jnp.ones((1, E), jnp.float32),
        "ln_attn_b": jnp.zeros((1, E), jnp.float32),
        "w1": jax.random.uniform(ks[8], (E, H), jnp.float32, -s_e, s_e),
        "b1": jax.random.uniform(ks[9], (1, H), jnp.float32, -s_e, s_e),
        "w2": jax.random.uniform(ks[10], (H, E), jnp.float32, -s_h, s_h),
        "b2": jax.random.uniform(ks[11], (1, E), jnp.float32, -s_h, s_h),
        "ln_ffn_g": jnp.ones((1, E), jnp.float32),
        "ln_ffn_b": jnp.zeros((1, E), jnp.float32),
    }


if __name__ == "__main__":
    B, S, E = 2, 8, 32
    key = jax.random.PRNGKey(0)
    k_x, k_p = jax.random.split(key)
    x = jax.random.normal(k_x, (B, S, E), jnp.float32)
    params = init_params(k_p, E)

    ref = jax.block_until_ready(pt_block_ref(x, params))

    # f32 MXU path: matches the PyTorch forward numerics.
    out = jax.block_until_ready(pt_block(x, params))
    np.testing.assert_allclose(np.asarray(out), np.asarray(ref),
                               rtol=1e-4, atol=1e-4)

    print("KERNEL_OK")
</pallas_src>

<mosaic_0001>
module attributes {stable_mosaic.version = 11 : i64} {
  func.func @pt_block_kernel(%arg0: i32, %arg1: memref<2x8x32xf32, #tpu.memory_space<vmem>>, %arg2: memref<32x96xf32, #tpu.memory_space<vmem>>, %arg3: memref<1x96xf32, #tpu.memory_space<vmem>>, %arg4: memref<32x32xf32, #tpu.memory_space<vmem>>, %arg5: memref<1x32xf32, #tpu.memory_space<vmem>>, %arg6: memref<1x32xf32, #tpu.memory_space<vmem>>, %arg7: memref<1x32xf32, #tpu.memory_space<vmem>>, %arg8: memref<32x128xf32, #tpu.memory_space<vmem>>, %arg9: memref<1x128xf32, #tpu.memory_space<vmem>>, %arg10: memref<128x32xf32, #tpu.memory_space<vmem>>, %arg11: memref<1x32xf32, #tpu.memory_space<vmem>>, %arg12: memref<1x32xf32, #tpu.memory_space<vmem>>, %arg13: memref<1x32xf32, #tpu.memory_space<vmem>>, %arg14: memref<2x8x32xf32, #tpu.memory_space<vmem>>) attributes {dimension_semantics = [#tpu.dimension_semantics<parallel>], iteration_bounds = array<i64: 1>, scalar_prefetch = 0 : i64, scratch_operands = 0 : i64, tpu.core_type = #tpu.core_type<tc>, window_params = [{transform_indices = @transform_0, window_bounds = array<i64: 2, 8, 32>}, {pipeline_mode = #tpu.pipeline_mode<synchronous>, transform_indices = @transform_1, window_bounds = array<i64: 32, 96>}, {pipeline_mode = #tpu.pipeline_mode<synchronous>, transform_indices = @transform_2, window_bounds = array<i64: 1, 96>}, {pipeline_mode = #tpu.pipeline_mode<synchronous>, transform_indices = @transform_3, window_bounds = array<i64: 32, 32>}, {pipeline_mode = #tpu.pipeline_mode<synchronous>, transform_indices = @transform_4, window_bounds = array<i64: 1, 32>}, {pipeline_mode = #tpu.pipeline_mode<synchronous>, transform_indices = @transform_5, window_bounds = array<i64: 1, 32>}, {pipeline_mode = #tpu.pipeline_mode<synchronous>, transform_indices = @transform_6, window_bounds = array<i64: 1, 32>}, {pipeline_mode = #tpu.pipeline_mode<synchronous>, transform_indices = @transform_7, window_bounds = array<i64: 32, 128>}, {pipeline_mode = #tpu.pipeline_mode<synchronous>, transform_indices = @transform_8, window_bounds = array<i64: 1, 128>}, {pipeline_mode = #tpu.pipeline_mode<synchronous>, transform_indices = @transform_9, window_bounds = array<i64: 128, 32>}, {pipeline_mode = #tpu.pipeline_mode<synchronous>, transform_indices = @transform_10, window_bounds = array<i64: 1, 32>}, {pipeline_mode = #tpu.pipeline_mode<synchronous>, transform_indices = @transform_11, window_bounds = array<i64: 1, 32>}, {pipeline_mode = #tpu.pipeline_mode<synchronous>, transform_indices = @transform_12, window_bounds = array<i64: 1, 32>}, {transform_indices = @transform_13, window_bounds = array<i64: 2, 8, 32>}]} {
    %c0 = arith.constant 0 : index
    %c0_0 = arith.constant 0 : index
    %0 = vector.load %arg3[%c0, %c0_0] : memref<1x96xf32, #tpu.memory_space<vmem>>, vector<1x96xf32>
    %c0_1 = arith.constant 0 : index
    %c0_2 = arith.constant 0 : index
    %1 = vector.load %arg5[%c0_1, %c0_2] : memref<1x32xf32, #tpu.memory_space<vmem>>, vector<1x32xf32>
    %c0_3 = arith.constant 0 : index
    %c0_4 = arith.constant 0 : index
    %2 = vector.load %arg6[%c0_3, %c0_4] : memref<1x32xf32, #tpu.memory_space<vmem>>, vector<1x32xf32>
    %c0_5 = arith.constant 0 : index
    %c0_6 = arith.constant 0 : index
    %3 = vector.load %arg7[%c0_5, %c0_6] : memref<1x32xf32, #tpu.memory_space<vmem>>, vector<1x32xf32>
    %c0_7 = arith.constant 0 : index
    %c0_8 = arith.constant 0 : index
    %4 = vector.load %arg9[%c0_7, %c0_8] : memref<1x128xf32, #tpu.memory_space<vmem>>, vector<1x128xf32>
    %c0_9 = arith.constant 0 : index
    %c0_10 = arith.constant 0 : index
    %5 = vector.load %arg11[%c0_9, %c0_10] : memref<1x32xf32, #tpu.memory_space<vmem>>, vector<1x32xf32>
    %c0_11 = arith.constant 0 : index
    %c0_12 = arith.constant 0 : index
    %6 = vector.load %arg12[%c0_11, %c0_12] : memref<1x32xf32, #tpu.memory_space<vmem>>, vector<1x32xf32>
    %c0_13 = arith.constant 0 : index
    %c0_14 = arith.constant 0 : index
    %7 = vector.load %arg13[%c0_13, %c0_14] : memref<1x32xf32, #tpu.memory_space<vmem>>, vector<1x32xf32>
    %c0_15 = arith.constant 0 : index
    %c0_16 = arith.constant 0 : index
    %c0_17 = arith.constant 0 : index
    %8 = vector.load %arg1[%c0_15, %c0_16, %c0_17] : memref<2x8x32xf32, #tpu.memory_space<vmem>>, vector<2x8x32xf32>
    %9 = vector.shape_cast %8 : vector<2x8x32xf32> to vector<16x32xf32>
    %cst = arith.constant dense<0.000000e+00> : vector<16xf32>
    %10 = vector.multi_reduction <add>, %9, %cst [1] : vector<16x32xf32> to vector<16xf32>
    %11 = vector.shape_cast %10 : vector<16xf32> to vector<16x1xf32>
    %cst_18 = arith.constant 3.200000e+01 : f32
    %12 = vector.broadcast %cst_18 : f32 to vector<16x1xf32>
    %13 = arith.divf %11, %12 : vector<16x1xf32>
    %14 = vector.broadcast %13 : vector<16x1xf32> to vector<16x32xf32>
    %15 = arith.subf %9, %14 : vector<16x32xf32>
    %16 = arith.mulf %15, %15 : vector<16x32xf32>
    %cst_19 = arith.constant dense<0.000000e+00> : vector<16xf32>
    %17 = vector.multi_reduction <add>, %16, %cst_19 [1] : vector<16x32xf32> to vector<16xf32>
    %18 = vector.shape_cast %17 : vector<16xf32> to vector<16x1xf32>
    %cst_20 = arith.constant 3.200000e+01 : f32
    %19 = vector.broadcast %cst_20 : f32 to vector<16x1xf32>
    %20 = arith.divf %18, %19 : vector<16x1xf32>
    %21 = vector.broadcast %13 : vector<16x1xf32> to vector<16x32xf32>
    %22 = arith.subf %9, %21 : vector<16x32xf32>
    %cst_21 = arith.constant 9.99999974E-6 : f32
    %23 = vector.broadcast %cst_21 : f32 to vector<16x1xf32>
    %24 = arith.addf %20, %23 : vector<16x1xf32>
    %25 = math.rsqrt %24 : vector<16x1xf32>
    %26 = vector.broadcast %25 : vector<16x1xf32> to vector<16x32xf32>
    %27 = arith.mulf %22, %26 : vector<16x32xf32>
    %28 = vector.broadcast %2 : vector<1x32xf32> to vector<16x32xf32>
    %29 = arith.mulf %27, %28 : vector<16x32xf32>
    %30 = vector.broadcast %3 : vector<1x32xf32> to vector<16x32xf32>
    %31 = arith.addf %29, %30 : vector<16x32xf32>
    %c0_22 = arith.constant 0 : index
    %c0_23 = arith.constant 0 : index
    %32 = vector.load %arg2[%c0_22, %c0_23] : memref<32x96xf32, #tpu.memory_space<vmem>>, vector<32x96xf32>
    %cst_24 = arith.constant dense<0.000000e+00> : vector<16x96xf32>
    %33 = tpu.matmul %31, %32, %cst_24 {dimension_numbers = #tpu.dot_dimension_numbers<[1], [0], [0], [1], [0, 0, 1, 1], [], []>} : vector<16x32xf32>, vector<32x96xf32>, vector<16x96xf32> -> vector<16x96xf32>
    %34 = vector.broadcast %0 : vector<1x96xf32> to vector<16x96xf32>
    %35 = arith.addf %33, %34 : vector<16x96xf32>
    %36 = vector.extract_strided_slice %35 {offsets = [0, 0], sizes = [16, 32], strides = [1, 1]} : vector<16x96xf32> to vector<16x32xf32>
    %37 = vector.shape_cast %36 : vector<16x32xf32> to vector<2x8x32xf32>
    %38 = vector.extract_strided_slice %35 {offsets = [0, 32], sizes = [16, 32], strides = [1, 1]} : vector<16x96xf32> to vector<16x32xf32>
    %39 = vector.shape_cast %38 : vector<16x32xf32> to vector<2x8x32xf32>
    %40 = vector.extract_strided_slice %35 {offsets = [0, 64], sizes = [16, 32], strides = [1, 1]} : vector<16x96xf32> to vector<16x32xf32>
    %41 = vector.shape_cast %40 : vector<16x32xf32> to vector<2x8x32xf32>
    "tpu.trace_start"() <{level = 10 : i32, message = "bqe,bke->bqk"}> : () -> ()
    %cst_25 = arith.constant dense<0.000000e+00> : vector<2x8x8xf32>
    %42 = tpu.matmul %37, %39, %cst_25 {dimension_numbers = #tpu.dot_dimension_numbers<[2], [2], [1], [1], [0, 0, 0, 1, 1, 1], [0], [0]>} : vector<2x8x32xf32>, vector<2x8x32xf32>, vector<2x8x8xf32> -> vector<2x8x8xf32>
    "tpu.trace_stop"() : () -> ()
    %cst_26 = arith.constant 0.176776692 : f32
    %43 = vector.broadcast %cst_26 : f32 to vector<2x8x8xf32>
    %44 = arith.mulf %42, %43 : vector<2x8x8xf32>
    %cst_27 = arith.constant dense<0xFF800000> : vector<2x8xf32>
    %45 = vector.multi_reduction <maximumf>, %44, %cst_27 [2] : vector<2x8x8xf32> to vector<2x8xf32>
    %46 = vector.shape_cast %45 : vector<2x8xf32> to vector<2x8x1xf32>
    %47 = vector.broadcast %46 : vector<2x8x1xf32> to vector<2x8x8xf32>
    %48 = arith.subf %44, %47 : vector<2x8x8xf32>
    %49 = math.exp %48 : vector<2x8x8xf32>
    %cst_28 = arith.constant dense<0.000000e+00> : vector<2x8xf32>
    %50 = vector.multi_reduction <add>, %49, %cst_28 [2] : vector<2x8x8xf32> to vector<2x8xf32>
    %51 = vector.shape_cast %50 : vector<2x8xf32> to vector<2x8x1xf32>
    %52 = tpu.reciprocal %51 : vector<2x8x1xf32> -> vector<2x8x1xf32>
    %53 = vector.broadcast %52 : vector<2x8x1xf32> to vector<2x8x8xf32>
    %54 = arith.mulf %49, %53 : vector<2x8x8xf32>
    "tpu.trace_start"() <{level = 10 : i32, message = "bqk,bke->bqe"}> : () -> ()
    %cst_29 = arith.constant dense<0.000000e+00> : vector<2x8x32xf32>
    %55 = tpu.matmul %54, %41, %cst_29 {dimension_numbers = #tpu.dot_dimension_numbers<[2], [1], [1], [2], [0, 0, 0, 1, 1, 2], [0], [0]>} : vector<2x8x8xf32>, vector<2x8x32xf32>, vector<2x8x32xf32> -> vector<2x8x32xf32>
    "tpu.trace_stop"() : () -> ()
    %56 = vector.shape_cast %55 : vector<2x8x32xf32> to vector<16x32xf32>
    %c0_30 = arith.constant 0 : index
    %c0_31 = arith.constant 0 : index
    %57 = vector.load %arg4[%c0_30, %c0_31] : memref<32x32xf32, #tpu.memory_space<vmem>>, vector<32x32xf32>
    %cst_32 = arith.constant dense<0.000000e+00> : vector<16x32xf32>
    %58 = tpu.matmul %56, %57, %cst_32 {dimension_numbers = #tpu.dot_dimension_numbers<[1], [0], [0], [1], [0, 0, 1, 1], [], []>} : vector<16x32xf32>, vector<32x32xf32>, vector<16x32xf32> -> vector<16x32xf32>
    %59 = vector.broadcast %1 : vector<1x32xf32> to vector<16x32xf32>
    %60 = arith.addf %58, %59 : vector<16x32xf32>
    %61 = arith.addf %9, %60 : vector<16x32xf32>
    %cst_33 = arith.constant dense<0.000000e+00> : vector<16xf32>
    %62 = vector.multi_reduction <add>, %61, %cst_33 [1] : vector<16x32xf32> to vector<16xf32>
    %63 = vector.shape_cast %62 : vector<16xf32> to vector<16x1xf32>
    %cst_34 = arith.constant 3.200000e+01 : f32
    %64 = vector.broadcast %cst_34 : f32 to vector<16x1xf32>
    %65 = arith.divf %63, %64 : vector<16x1xf32>
    %66 = vector.broadcast %65 : vector<16x1xf32> to vector<16x32xf32>
    %67 = arith.subf %61, %66 : vector<16x32xf32>
    %68 = arith.mulf %67, %67 : vector<16x32xf32>
    %cst_35 = arith.constant dense<0.000000e+00> : vector<16xf32>
    %69 = vector.multi_reduction <add>, %68, %cst_35 [1] : vector<16x32xf32> to vector<16xf32>
    %70 = vector.shape_cast %69 : vector<16xf32> to vector<16x1xf32>
    %cst_36 = arith.constant 3.200000e+01 : f32
    %71 = vector.broadcast %cst_36 : f32 to vector<16x1xf32>
    %72 = arith.divf %70, %71 : vector<16x1xf32>
    %73 = vector.broadcast %65 : vector<16x1xf32> to vector<16x32xf32>
    %74 = arith.subf %61, %73 : vector<16x32xf32>
    %cst_37 = arith.constant 9.99999974E-6 : f32
    %75 = vector.broadcast %cst_37 : f32 to vector<16x1xf32>
    %76 = arith.addf %72, %75 : vector<16x1xf32>
    %77 = math.rsqrt %76 : vector<16x1xf32>
    %78 = vector.broadcast %77 : vector<16x1xf32> to vector<16x32xf32>
    %79 = arith.mulf %74, %78 : vector<16x32xf32>
    %80 = vector.broadcast %6 : vector<1x32xf32> to vector<16x32xf32>
    %81 = arith.mulf %79, %80 : vector<16x32xf32>
    %82 = vector.broadcast %7 : vector<1x32xf32> to vector<16x32xf32>
    %83 = arith.addf %81, %82 : vector<16x32xf32>
    %c0_38 = arith.constant 0 : index
    %c0_39 = arith.constant 0 : index
    %84 = vector.load %arg8[%c0_38, %c0_39] : memref<32x128xf32, #tpu.memory_space<vmem>>, vector<32x128xf32>
    %cst_40 = arith.constant dense<0.000000e+00> : vector<16x128xf32>
    %85 = tpu.matmul %83, %84, %cst_40 {dimension_numbers = #tpu.dot_dimension_numbers<[1], [0], [0], [1], [0, 0, 1, 1], [], []>} : vector<16x32xf32>, vector<32x128xf32>, vector<16x128xf32> -> vector<16x128xf32>
    %86 = vector.broadcast %4 : vector<1x128xf32> to vector<16x128xf32>
    %87 = arith.addf %85, %86 : vector<16x128xf32>
    %cst_41 = arith.constant 0.000000e+00 : f32
    %88 = vector.broadcast %cst_41 : f32 to vector<16x128xf32>
    %89 = arith.maximumf %87, %88 : vector<16x128xf32>
    %c0_42 = arith.constant 0 : index
    %c0_43 = arith.constant 0 : index
    %90 = vector.load %arg10[%c0_42, %c0_43] : memref<128x32xf32, #tpu.memory_space<vmem>>, vector<128x32xf32>
    %cst_44 = arith.constant dense<0.000000e+00> : vector<16x32xf32>
    %91 = tpu.matmul %89, %90, %cst_44 {dimension_numbers = #tpu.dot_dimension_numbers<[1], [0], [0], [1], [0, 0, 1, 1], [], []>} : vector<16x128xf32>, vector<128x32xf32>, vector<16x32xf32> -> vector<16x32xf32>
    %92 = vector.broadcast %5 : vector<1x32xf32> to vector<16x32xf32>
    %93 = arith.addf %91, %92 : vector<16x32xf32>
    %94 = arith.addf %61, %93 : vector<16x32xf32>
    %95 = vector.shape_cast %94 : vector<16x32xf32> to vector<2x8x32xf32>
    %c0_45 = arith.constant 0 : index
    %c0_46 = arith.constant 0 : index
    %c0_47 = arith.constant 0 : index
    %96 = vector.load %arg14[%c0_45, %c0_46, %c0_47] : memref<2x8x32xf32, #tpu.memory_space<vmem>>, vector<2x8x32xf32>
    tpu.vector_store %arg14[%c0_45, %c0_46, %c0_47], %95 {strides = array<i32>} : memref<2x8x32xf32, #tpu.memory_space<vmem>>, vector<2x8x32xf32>,
    return
  }
  func.func @transform_0(%arg0: i32) -> (i32, i32, i32) {
    %c0_i32 = arith.constant 0 : i32
    %c0_i32_0 = arith.constant 0 : i32
    %c0_i32_1 = arith.constant 0 : i32
    return %arg0, %c0_i32, %c0_i32_0 : i32, i32, i32
  }
  func.func @transform_1(%arg0: i32) -> (i32, i32) {
    %c0_i32 = arith.constant 0 : i32
    %c0_i32_0 = arith.constant 0 : i32
    %c0_i32_1 = arith.constant 0 : i32
    return %c0_i32, %c0_i32_0 : i32, i32
  }
  func.func @transform_2(%arg0: i32) -> (i32, i32) {
    %c0_i32 = arith.constant 0 : i32
    %c0_i32_0 = arith.constant 0 : i32
    %c0_i32_1 = arith.constant 0 : i32
    return %c0_i32, %c0_i32_0 : i32, i32
  }
  func.func @transform_3(%arg0: i32) -> (i32, i32) {
    %c0_i32 = arith.constant 0 : i32
    %c0_i32_0 = arith.constant 0 : i32
    %c0_i32_1 = arith.constant 0 : i32
    return %c0_i32, %c0_i32_0 : i32, i32
  }
  func.func @transform_4(%arg0: i32) -> (i32, i32) {
    %c0_i32 = arith.constant 0 : i32
    %c0_i32_0 = arith.constant 0 : i32
    %c0_i32_1 = arith.constant 0 : i32
    return %c0_i32, %c0_i32_0 : i32, i32
  }
  func.func @transform_5(%arg0: i32) -> (i32, i32) {
    %c0_i32 = arith.constant 0 : i32
    %c0_i32_0 = arith.constant 0 : i32
    %c0_i32_1 = arith.constant 0 : i32
    return %c0_i32, %c0_i32_0 : i32, i32
  }
  func.func @transform_6(%arg0: i32) -> (i32, i32) {
    %c0_i32 = arith.constant 0 : i32
    %c0_i32_0 = arith.constant 0 : i32
    %c0_i32_1 = arith.constant 0 : i32
    return %c0_i32, %c0_i32_0 : i32, i32
  }
  func.func @transform_7(%arg0: i32) -> (i32, i32) {
    %c0_i32 = arith.constant 0 : i32
    %c0_i32_0 = arith.constant 0 : i32
    %c0_i32_1 = arith.constant 0 : i32
    return %c0_i32, %c0_i32_0 : i32, i32
  }
  func.func @transform_8(%arg0: i32) -> (i32, i32) {
    %c0_i32 = arith.constant 0 : i32
    %c0_i32_0 = arith.constant 0 : i32
    %c0_i32_1 = arith.constant 0 : i32
    return %c0_i32, %c0_i32_0 : i32, i32
  }
  func.func @transform_9(%arg0: i32) -> (i32, i32) {
    %c0_i32 = arith.constant 0 : i32
    %c0_i32_0 = arith.constant 0 : i32
    %c0_i32_1 = arith.constant 0 : i32
    return %c0_i32, %c0_i32_0 : i32, i32
  }
  func.func @transform_10(%arg0: i32) -> (i32, i32) {
    %c0_i32 = arith.constant 0 : i32
    %c0_i32_0 = arith.constant 0 : i32
    %c0_i32_1 = arith.constant 0 : i32
    return %c0_i32, %c0_i32_0 : i32, i32
  }
  func.func @transform_11(%arg0: i32) -> (i32, i32) {
    %c0_i32 = arith.constant 0 : i32
    %c0_i32_0 = arith.constant 0 : i32
    %c0_i32_1 = arith.constant 0 : i32
    return %c0_i32, %c0_i32_0 : i32, i32
  }
  func.func @transform_12(%arg0: i32) -> (i32, i32) {
    %c0_i32 = arith.constant 0 : i32
    %c0_i32_0 = arith.constant 0 : i32
    %c0_i32_1 = arith.constant 0 : i32
    return %c0_i32, %c0_i32_0 : i32, i32
  }
  func.func @transform_13(%arg0: i32) -> (i32, i32, i32) {
    %c0_i32 = arith.constant 0 : i32
    %c0_i32_0 = arith.constant 0 : i32
    %c0_i32_1 = arith.constant 0 : i32
    return %arg0, %c0_i32, %c0_i32_0 : i32, i32, i32
  }
}

</mosaic_0001>

<llo_original>
// kernel: tpu_custom_call.1
$region0: #{tpu_custom_call.1}
  #allocation0 [shape = 'u32[]', space=smem, size = 0x4, offset = 0x4, fixed_abs, tag = 'smem constant byte address 0x4 - core index']
  #allocation1 [shape = 'u32[72,128]{1,0:T(1,128)}', space=vmem, size = 0x9000, scoped, tag = 'internal scratch']
  %s0 = inlined_call_operand.vmem [shape: f32[2,8,32], index: 0, kind: input, shape index: {}]
  %s1 = inlined_call_operand.vmem [shape: f32[32,96], index: 1, kind: input, shape index: {}]
  %s2 = inlined_call_operand.vmem [shape: f32[1,96], index: 2, kind: input, shape index: {}]
  %s3 = inlined_call_operand.vmem [shape: f32[32,32], index: 3, kind: input, shape index: {}]
  %s4 = inlined_call_operand.vmem [shape: f32[1,32], index: 4, kind: input, shape index: {}]
  %s5 = inlined_call_operand.vmem [shape: f32[1,32], index: 5, kind: input, shape index: {}]
  %s6 = inlined_call_operand.vmem [shape: f32[1,32], index: 6, kind: input, shape index: {}]
  %s7 = inlined_call_operand.vmem [shape: f32[32,128], index: 7, kind: input, shape index: {}]
  %s8 = inlined_call_operand.vmem [shape: f32[1,128], index: 8, kind: input, shape index: {}]
  %s9 = inlined_call_operand.vmem [shape: f32[128,32], index: 9, kind: input, shape index: {}]
  %s10 = inlined_call_operand.vmem [shape: f32[1,32], index: 10, kind: input, shape index: {}]
  %s11 = inlined_call_operand.vmem [shape: f32[1,32], index: 11, kind: input, shape index: {}]
  %s12 = inlined_call_operand.vmem [shape: f32[1,32], index: 12, kind: input, shape index: {}]
  %s13 = inlined_call_operand.hbm [shape: f32[2,8,32], index: 13, kind: output, shape index: {}]
  %s14 = sld [smem:[#allocation0]]
  $region62: #{tpu_custom_call.1} parent=0
    _
  %s16 = ssub.s32 1, %s14
  %s17 = scalar_select 0, %s16, %s14
  $region1: #{tpu_custom_call.1} parent=0
    #allocation2 [shape = 'u8[8192]{0}', space=vmem, size = 0x2000, scoped, tag = 'output window, operand 0, single buffered']
    #allocation3 [shape = 's32[1]{0}', space=sflag, size = 0x4, scoped, tag = 'scoped memory for tpu_custom_call.1']
    %18 = vsyncpa [#allocation3], 0
    // Predicated region
    $region2: #{tpu_custom_call.1} parent=1 // pred_check
      _
    $region3: #{tpu_custom_call.1} parent=1 // pred_check_branch
      %20 = sbr.rel (0) target = $region5
    $region4: #{tpu_custom_call.1} parent=1 // pred_region
      _
    $region5: #{tpu_custom_call.1} parent=1 // pred_fallthru
      _
    // Predicated region
    $region6: #{tpu_custom_call.1} parent=1 // pred_check
      _
    $region7: #{tpu_custom_call.1} parent=1 // pred_check_branch
      %22 = sbr.rel (0) target = $region9
    $region8: #{tpu_custom_call.1} parent=1 // pred_region
      _
    $region9: #{tpu_custom_call.1} parent=1 // pred_fallthru
      _
    // Predicated region
    $region10: #{tpu_custom_call.1} parent=1 // pred_check
      _
    $region11: #{tpu_custom_call.1} parent=1 // pred_check_branch
      %24 = sbr.rel (0) target = $region13
    $region12: #{tpu_custom_call.1} parent=1 // pred_region
      _
    $region13: #{tpu_custom_call.1} parent=1 // pred_fallthru
      _
    // Predicated region
    $region14: #{tpu_custom_call.1} parent=1 // pred_check
      _
    $region15: #{tpu_custom_call.1} parent=1 // pred_check_branch
      %26 = sbr.rel (0) target = $region17
    $region16: #{tpu_custom_call.1} parent=1 // pred_region
      _
    $region17: #{tpu_custom_call.1} parent=1 // pred_fallthru
      _
    // Predicated region
    $region18: #{tpu_custom_call.1} parent=1 // pred_check
      _
    $region19: #{tpu_custom_call.1} parent=1 // pred_check_branch
      %28 = sbr.rel (0) target = $region21
    $region20: #{tpu_custom_call.1} parent=1 // pred_region
      _
    $region21: #{tpu_custom_call.1} parent=1 // pred_fallthru
      _
    // Predicated region
    $region22: #{tpu_custom_call.1} parent=1 // pred_check
      _
    $region23: #{tpu_custom_call.1} parent=1 // pred_check_branch
      %30 = sbr.rel (0) target = $region25
    $region24: #{tpu_custom_call.1} parent=1 // pred_region
      _
    $region25: #{tpu_custom_call.1} parent=1 // pred_fallthru
      _
    // Predicated region
    $region26: #{tpu_custom_call.1} parent=1 // pred_check
      _
    $region27: #{tpu_custom_call.1} parent=1 // pred_check_branch
      %32 = sbr.rel (0) target = $region29
    $region28: #{tpu_custom_call.1} parent=1 // pred_region
      _
    $region29: #{tpu_custom_call.1} parent=1 // pred_fallthru
      _
    // Predicated region
    $region30: #{tpu_custom_call.1} parent=1 // pred_check
      _
    $region31: #{tpu_custom_call.1} parent=1 // pred_check_branch
      %34 = sbr.rel (0) target = $region33
    $region32: #{tpu_custom_call.1} parent=1 // pred_region
      _
    $region33: #{tpu_custom_call.1} parent=1 // pred_fallthru
      _
    // Predicated region
    $region34: #{tpu_custom_call.1} parent=1 // pred_check
      _
    $region35: #{tpu_custom_call.1} parent=1 // pred_check_branch
      %36 = sbr.rel (0) target = $region37
    $region36: #{tpu_custom_call.1} parent=1 // pred_region
      _
    $region37: #{tpu_custom_call.1} parent=1 // pred_fallthru
      _
    // Predicated region
    $region38: #{tpu_custom_call.1} parent=1 // pred_check
      _
    $region39: #{tpu_custom_call.1} parent=1 // pred_check_branch
      %38 = sbr.rel (0) target = $region41
    $region40: #{tpu_custom_call.1} parent=1 // pred_region
      _
    $region41: #{tpu_custom_call.1} parent=1 // pred_fallthru
      _
    // Predicated region
    $region42: #{tpu_custom_call.1} parent=1 // pred_check
      _
    $region43: #{tpu_custom_call.1} parent=1 // pred_check_branch
      %40 = sbr.rel (0) target = $region45
    $region44: #{tpu_custom_call.1} parent=1 // pred_region
      _
    $region45: #{tpu_custom_call.1} parent=1 // pred_fallthru
      _
    // Predicated region
    $region46: #{tpu_custom_call.1} parent=1 // pred_check
      _
    $region47: #{tpu_custom_call.1} parent=1 // pred_check_branch
      %42 = sbr.rel (0) target = $region49
    $region48: #{tpu_custom_call.1} parent=1 // pred_region
      _
    $region49: #{tpu_custom_call.1} parent=1 // pred_fallthru
      _
    // Predicated region
    $region50: #{tpu_custom_call.1} parent=1 // pred_check
      _
    $region51: #{tpu_custom_call.1} parent=1 // pred_check_branch
      %44 = sbr.rel (0) target = $region53
    $region52: #{tpu_custom_call.1} parent=1 // pred_region
      _
    $region53: #{tpu_custom_call.1} parent=1 // pred_fallthru
      _
    %v45 = vld [vmem:[%s2] sm:$0x1]
    %v46 = vld [vmem:[%s4] sm:$0x1]
    %v47 = vld [vmem:[%s5] sm:$0x1]
    %v48 = vld [vmem:[%s6] sm:$0x1]
    %v49 = vld [vmem:[%s8] sm:$0x1]
    %v50 = vld [vmem:[%s10] sm:$0x1]
    %v51 = vld [vmem:[%s11] sm:$0x1]
    %v52 = vld [vmem:[%s12] sm:$0x1]
    %v53 = vld [vmem:[%s0] sm:$0xff]
    %v54 = vld [vmem:[%s0 + $0x8] sm:$0xff]
    %vm55 = vcmask 261120
    %v56 = vsel %vm55, %v53, 0.0
    %57 = vadd.xlane.f32.xlu0 %v56
    %v58 = vpop.xlane.xlu0 %57
    %v59 = vsel %vm55, %v54, 0.0
    %60 = vadd.xlane.f32.xlu0 %v59
    %v61 = vpop.xlane.xlu0 %60
    %v62 = vrcp.pop 32.0
    %v63 = vmul.f32 32.0, %v62
    %v64 = vsub.f32 1.0, %v63
    %v65 = vmul.f32 %v62, %v64
    %v66 = vadd.f32 %v62, %v65
    %vm67 = vweird.f32 %v62
    %v68 = vsel %vm67, %v62, %v66
    %v69 = vmul.f32 %v58, %v68
    %v70 = vmul.f32 %v61, %v68
    %v71 = vsub.f32 %v53, %v69
    %v72 = vsub.f32 %v54, %v70
    %v73 = vmul.f32 %v71, %v71
    %v74 = vmul.f32 %v72, %v72
    %v75 = vsel %vm55, %v73, 0.0
    %76 = vadd.xlane.f32.xlu0 %v75
    %v77 = vpop.xlane.xlu0 %76
    %v78 = vsel %vm55, %v74, 0.0
    %79 = vadd.xlane.f32.xlu0 %v78
    %v80 = vpop.xlane.xlu0 %79
    %v81 = vmul.f32 %v77, %v68
    %v82 = vmul.f32 %v80, %v68
    %v83 = vadd.f32 %v81, 1e-05
    %v84 = vadd.f32 %v82, 1e-05
    %v85 = vrsqrt.pop %v83
    %v86 = vmul.f32 %v85, %v83
    %v87 = vmul.f32 %v86, %v85
    %v88 = vmul.f32 0.5, %v87
    %v89 = vsub.f32 1.5, %v88
    %v90 = vmul.f32 %v85, %v89
    %vm91 = vweird.f32 %v83
    %vm92 = vweird.f32 %v85
    %vm93 = vmor %vm91, %vm92
    %v94 = vsel %vm93, %v85, %v90
    %v95 = vrsqrt.pop %v84
    %v96 = vmul.f32 %v95, %v84
    %v97 = vmul.f32 %v96, %v95
    %v98 = vmul.f32 0.5, %v97
    %v99 = vsub.f32 1.5, %v98
    %v100 = vmul.f32 %v95, %v99
    %vm101 = vweird.f32 %v84
    %vm102 = vweird.f32 %v95
    %vm103 = vmor %vm101, %vm102
    %v104 = vsel %vm103, %v95, %v100
    %v105 = vmul.f32 %v71, %v94
    %v106 = vmul.f32 %v72, %v104
    %v108 = vperm.slane %v47, 0
    %v110 = vmul.f32 %v105, %v108
    %v111 = vmul.f32 %v106, %v108
    %v113 = vperm.slane %v48, 0
    %v115 = vadd.f32 %v110, %v113
    %v116 = vadd.f32 %v111, %v113
    %v117 = vld [vmem:[%s1] sm:$0xff]
    %v118 = vld [vmem:[%s1 + $0x8] sm:$0xff]
    %v119 = vld [vmem:[%s1 + $0x10] sm:$0xff]
    %v120 = vld [vmem:[%s1 + $0x18] sm:$0xff]
    %v122 = vperm.slane %v45, 0
    %v125 = vsel %vm55, %v115, 0
    %v128 = vsel %vm55, %v116, 0
    %130 = vmatpush.msra.mxu0 0.0
    %131 = vmatpush.msra.mxu0 0.0
    %132 = vmatpush.msra.mxu0 0.0
    %133 = vmatpush.msra.mxu0 0.0
    %134 = vmatpush.msra.mxu0 0.0
    %135 = vmatpush.msra.mxu0 0.0
    %136 = vmatpush.msra.mxu0 0.0
    %137 = vmatpush.msra.mxu0 0.0
    %138 = vmatpush.msra.mxu0 0.0
    %139 = vmatpush.msra.mxu0 0.0
    %140 = vmatpush.msra.mxu0 0.0
    %141 = vmatpush.msra.mxu0 0.0
    %142 = vmatpush.msra.mxu0 %v120
    %143 = vmatpush.msra.mxu0 %v119
    %144 = vmatpush.msra.mxu0 %v118
    %145 = vmatpush.msra.mxu0 %v117
    %146 = vmatmul.f32.gmra.mxu0 %v125
    %v147 = vpop.f32.mrf.mxu0
    %v148 = vadd.f32 %v122, %v147
    %149 = vmatmul.f32.gmra.mxu0 %v128
    %v150 = vpop.f32.mrf.mxu0
    %v151 = vadd.f32 %v122, %v150
    %152 = vdwg.mxu0
    %154 = vrot.lane.b32.xlu0 %v148, 96
    %v155 = vpop.permute.xlu0 %154
    %v156 = vsel %vm55, %v148, 0
    %v158 = vsel %vm55, %v155, 0
    %160 = vmatpush.xpose.msra.mxu0 0.0
    %161 = vmatpush.xpose.msra.mxu0 0.0
    %162 = vmatpush.xpose.msra.mxu0 0.0
    %163 = vmatpush.xpose.msra.mxu0 0.0
    %164 = vmatpush.xpose.msra.mxu0 0.0
    %165 = vmatpush.xpose.msra.mxu0 0.0
    %166 = vmatpush.xpose.msra.mxu0 0.0
    %167 = vmatpush.xpose.msra.mxu0 0.0
    %168 = vmatpush.xpose.msra.mxu0 0.0
    %169 = vmatpush.xpose.msra.mxu0 0.0
    %170 = vmatpush.xpose.msra.mxu0 0.0
    %171 = vmatpush.xpose.msra.mxu0 0.0
    %172 = vmatpush.xpose.msra.mxu0 0.0
    %173 = vmatpush.xpose.msra.mxu0 0.0
    %174 = vmatpush.xpose.msra.mxu0 0.0
    %175 = vmatpush.xpose.msra.mxu0 %v158
    %176 = vmatmul.f32.gmra.mxu0 %v156
    %v177 = vpop.f32.mrf.mxu0
    %v178 = vadd.f32 0.0, %v177
    %179 = vdwg.mxu0
    %181 = vrot.lane.b32.xlu0 %v151, 96
    %v182 = vpop.permute.xlu0 %181
    %v183 = vsel %vm55, %v151, 0
    %v185 = vsel %vm55, %v182, 0
    %187 = vmatpush.xpose.msra.mxu0 0.0
    %188 = vmatpush.xpose.msra.mxu0 0.0
    %189 = vmatpush.xpose.msra.mxu0 0.0
    %190 = vmatpush.xpose.msra.mxu0 0.0
    %191 = vmatpush.xpose.msra.mxu0 0.0
    %192 = vmatpush.xpose.msra.mxu0 0.0
    %193 = vmatpush.xpose.msra.mxu0 0.0
    %194 = vmatpush.xpose.msra.mxu0 0.0
    %195 = vmatpush.xpose.msra.mxu0 0.0
    %196 = vmatpush.xpose.msra.mxu0 0.0
    %197 = vmatpush.xpose.msra.mxu0 0.0
    %198 = vmatpush.xpose.msra.mxu0 0.0
    %199 = vmatpush.xpose.msra.mxu0 0.0
    %200 = vmatpush.xpose.msra.mxu0 0.0
    %201 = vmatpush.xpose.msra.mxu0 0.0
    %202 = vmatpush.xpose.msra.mxu0 %v185
    %203 = vmatmul.f32.gmra.mxu0 %v183
    %v204 = vpop.f32.mrf.mxu0
    %v205 = vadd.f32 0.0, %v204
    %206 = vdwg.mxu0
    %v207 = vmul.f32 %v178, 0.17677669
    %v208 = vmul.f32 %v205, 0.17677669
    %vm209 = vcmask 64512
    %v210 = vsel %vm209, %v207, -inf
    %211 = vmax.xlane.f32.xlu0 %v210
    %v212 = vpop.xlane.xlu0 %211
    %v213 = vsel %vm209, %v208, -inf
    %214 = vmax.xlane.f32.xlu0 %v213
    %v215 = vpop.xlane.xlu0 %214
    %v216 = vsub.f32 %v207, %v212
    %v217 = vsub.f32 %v208, %v215
    %v218 = vmul.f32 %v216, 1.442695
    %v219 = vpow.pop %v218
    %v220 = vmul.f32 %v217, 1.442695
    %v221 = vpow.pop %v220
    %v222 = vsel %vm209, %v219, 0.0
    %223 = vadd.xlane.f32.xlu0 %v222
    %v224 = vpop.xlane.xlu0 %223
    %v225 = vsel %vm209, %v221, 0.0
    %226 = vadd.xlane.f32.xlu0 %v225
    %v227 = vpop.xlane.xlu0 %226
    %v228 = vrcp.pop %v224
    %v229 = vmul.f32 %v224, %v228
    %v230 = vsub.f32 1.0, %v229
    %v231 = vmul.f32 %v228, %v230
    %v232 = vadd.f32 %v228, %v231
    %vm233 = vweird.f32 %v224
    %vm234 = vweird.f32 %v228
    %vm235 = vmor %vm233, %vm234
    %v236 = vsel %vm235, %v228, %v232
    %v237 = vand.u32 2147483647, %v224
    %vm238 = vcmp.eq.f32.partialorder %v237, 8.507059e+37
    %v239 = vand.u32 %v224, 2147483648
    %v240 = vor.u32 1.1754944e-38, %v239
    %v241 = vsel %vm238, %v240, %v236
    %v242 = vrcp.pop %v227
    %v243 = vmul.f32 %v227, %v242
    %v244 = vsub.f32 1.0, %v243
    %v245 = vmul.f32 %v242, %v244
    %v246 = vadd.f32 %v242, %v245
    %vm247 = vweird.f32 %v227
    %vm248 = vweird.f32 %v242
    %vm249 = vmor %vm247, %vm248
    %v250 = vsel %vm249, %v242, %v246
    %v251 = vand.u32 2147483647, %v227
    %vm252 = vcmp.eq.f32.partialorder %v251, 8.507059e+37
    %v253 = vand.u32 %v227, 2147483648
    %v254 = vor.u32 1.1754944e-38, %v253
    %v255 = vsel %vm252, %v254, %v250
    %v256 = vmul.f32 %v219, %v241
    %v257 = vmul.f32 %v221, %v255
    %258 = vrot.lane.b32.xlu0 %v148, 64
    %v259 = vpop.permute.xlu0 %258
    %v262 = vsel %vm209, %v256, 0
    %264 = vmatpush.msra.mxu0 0.0
    %265 = vmatpush.msra.mxu0 0.0
    %266 = vmatpush.msra.mxu0 0.0
    %267 = vmatpush.msra.mxu0 0.0
    %268 = vmatpush.msra.mxu0 0.0
    %269 = vmatpush.msra.mxu0 0.0
    %270 = vmatpush.msra.mxu0 0.0
    %271 = vmatpush.msra.mxu0 0.0
    %272 = vmatpush.msra.mxu0 0.0
    %273 = vmatpush.msra.mxu0 0.0
    %274 = vmatpush.msra.mxu0 0.0
    %275 = vmatpush.msra.mxu0 0.0
    %276 = vmatpush.msra.mxu0 0.0
    %277 = vmatpush.msra.mxu0 0.0
    %278 = vmatpush.msra.mxu0 0.0
    %279 = vmatpush.msra.mxu0 %v259
    %280 = vmatmul.f32.gmra.mxu0 %v262
    %v281 = vpop.f32.mrf.mxu0
    %v282 = vadd.f32 0.0, %v281
    %283 = vdwg.mxu0
    %284 = vrot.lane.b32.xlu0 %v151, 64
    %v285 = vpop.permute.xlu0 %284
    %v288 = vsel %vm209, %v257, 0
    %290 = vmatpush.msra.mxu0 0.0
    %291 = vmatpush.msra.mxu0 0.0
    %292 = vmatpush.msra.mxu0 0.0
    %293 = vmatpush.msra.mxu0 0.0
    %294 = vmatpush.msra.mxu0 0.0
    %295 = vmatpush.msra.mxu0 0.0
    %296 = vmatpush.msra.mxu0 0.0
    %297 = vmatpush.msra.mxu0 0.0
    %298 = vmatpush.msra.mxu0 0.0
    %299 = vmatpush.msra.mxu0 0.0
    %300 = vmatpush.msra.mxu0 0.0
    %301 = vmatpush.msra.mxu0 0.0
    %302 = vmatpush.msra.mxu0 0.0
    %303 = vmatpush.msra.mxu0 0.0
    %304 = vmatpush.msra.mxu0 0.0
    %305 = vmatpush.msra.mxu0 %v285
    %306 = vmatmul.f32.gmra.mxu0 %v288
    %v307 = vpop.f32.mrf.mxu0
    %v308 = vadd.f32 0.0, %v307
    %309 = vdwg.mxu0
    %v310 = vld [vmem:[%s3] sm:$0xff]
    %v311 = vld [vmem:[%s3 + $0x8] sm:$0xff]
    %v312 = vld [vmem:[%s3 + $0x10] sm:$0xff]
    %v313 = vld [vmem:[%s3 + $0x18] sm:$0xff]
    %v315 = vperm.slane %v46, 0
    %v318 = vsel %vm55, %v282, 0
    %v321 = vsel %vm55, %v308, 0
    %323 = vmatpush.msra.mxu0 0.0
    %324 = vmatpush.msra.mxu0 0.0
    %325 = vmatpush.msra.mxu0 0.0
    %326 = vmatpush.msra.mxu0 0.0
    %327 = vmatpush.msra.mxu0 0.0
    %328 = vmatpush.msra.mxu0 0.0
    %329 = vmatpush.msra.mxu0 0.0
    %330 = vmatpush.msra.mxu0 0.0
    %331 = vmatpush.msra.mxu0 0.0
    %332 = vmatpush.msra.mxu0 0.0
    %333 = vmatpush.msra.mxu0 0.0
    %334 = vmatpush.msra.mxu0 0.0
    %335 = vmatpush.msra.mxu0 %v313
    %336 = vmatpush.msra.mxu0 %v312
    %337 = vmatpush.msra.mxu0 %v311
    %338 = vmatpush.msra.mxu0 %v310
    %339 = vmatmul.f32.gmra.mxu0 %v318
    %v340 = vpop.f32.mrf.mxu0
    %v341 = vadd.f32 %v315, %v340
    %342 = vmatmul.f32.gmra.mxu0 %v321
    %v343 = vpop.f32.mrf.mxu0
    %v344 = vadd.f32 %v315, %v343
    %345 = vdwg.mxu0
    %v346 = vadd.f32 %v53, %v341
    %v347 = vadd.f32 %v54, %v344
    %v348 = vsel %vm55, %v346, 0.0
    %349 = vadd.xlane.f32.xlu0 %v348
    %v350 = vpop.xlane.xlu0 %349
    %v351 = vsel %vm55, %v347, 0.0
    %352 = vadd.xlane.f32.xlu0 %v351
    %v353 = vpop.xlane.xlu0 %352
    %v354 = vmul.f32 %v350, %v68
    %v355 = vmul.f32 %v353, %v68
    %v356 = vsub.f32 %v346, %v354
    %v357 = vsub.f32 %v347, %v355
    %v358 = vmul.f32 %v356, %v356
    %v359 = vmul.f32 %v357, %v357
    %v360 = vsel %vm55, %v358, 0.0
    %361 = vadd.xlane.f32.xlu0 %v360
    %v362 = vpop.xlane.xlu0 %361
    %v363 = vsel %vm55, %v359, 0.0
    %364 = vadd.xlane.f32.xlu0 %v363
    %v365 = vpop.xlane.xlu0 %364
    %v366 = vmul.f32 %v362, %v68
    %v367 = vmul.f32 %v365, %v68
    %v368 = vadd.f32 %v366, 1e-05
    %v369 = vadd.f32 %v367, 1e-05
    %v370 = vrsqrt.pop %v368
    %v371 = vmul.f32 %v370, %v368
    %v372 = vmul.f32 %v371, %v370
    %v373 = vmul.f32 0.5, %v372
    %v374 = vsub.f32 1.5, %v373
    %v375 = vmul.f32 %v370, %v374
    %vm376 = vweird.f32 %v368
    %vm377 = vweird.f32 %v370
    %vm378 = vmor %vm376, %vm377
    %v379 = vsel %vm378, %v370, %v375
    %v380 = vrsqrt.pop %v369
    %v381 = vmul.f32 %v380, %v369
    %v382 = vmul.f32 %v381, %v380
    %v383 = vmul.f32 0.5, %v382
    %v384 = vsub.f32 1.5, %v383
    %v385 = vmul.f32 %v380, %v384
    %vm386 = vweird.f32 %v369
    %vm387 = vweird.f32 %v380
    %vm388 = vmor %vm386, %vm387
    %v389 = vsel %vm388, %v380, %v385
    %v390 = vmul.f32 %v356, %v379
    %v391 = vmul.f32 %v357, %v389
    %v393 = vperm.slane %v51, 0
    %v395 = vmul.f32 %v390, %v393
    %v396 = vmul.f32 %v391, %v393
    %v398 = vperm.slane %v52, 0
    %v400 = vadd.f32 %v395, %v398
    %v401 = vadd.f32 %v396, %v398
    %v402 = vld [vmem:[%s7] sm:$0xff]
    %v403 = vld [vmem:[%s7 + $0x8] sm:$0xff]
    %v404 = vld [vmem:[%s7 + $0x10] sm:$0xff]
    %v405 = vld [vmem:[%s7 + $0x18] sm:$0xff]
    %v407 = vperm.slane %v49, 0
    %v410 = vsel %vm55, %v400, 0
    %v413 = vsel %vm55, %v401, 0
    %415 = vmatpush.msra.mxu0 0.0
    %416 = vmatpush.msra.mxu0 0.0
    %417 = vmatpush.msra.mxu0 0.0
    %418 = vmatpush.msra.mxu0 0.0
    %419 = vmatpush.msra.mxu0 0.0
    %420 = vmatpush.msra.mxu0 0.0
    %421 = vmatpush.msra.mxu0 0.0
    %422 = vmatpush.msra.mxu0 0.0
    %423 = vmatpush.msra.mxu0 0.0
    %424 = vmatpush.msra.mxu0 0.0
    %425 = vmatpush.msra.mxu0 0.0
    %426 = vmatpush.msra.mxu0 0.0
    %427 = vmatpush.msra.mxu0 %v405
    %428 = vmatpush.msra.mxu0 %v404
    %429 = vmatpush.msra.mxu0 %v403
    %430 = vmatpush.msra.mxu0 %v402
    %431 = vmatmul.f32.gmra.mxu0 %v410
    %v432 = vpop.f32.mrf.mxu0
    %v433 = vadd.f32 %v407, %v432
    %434 = vmatmul.f32.gmra.mxu0 %v413
    %v435 = vpop.f32.mrf.mxu0
    %v436 = vadd.f32 %v407, %v435
    %437 = vdwg.mxu0
    %v438 = vmax.f32 %v433, 0.0
    %v439 = vmax.f32 %v436, 0.0
    %v440 = vld [vmem:[%s9] sm:$0xff]
    %v441 = vld [vmem:[%s9 + $0x8] sm:$0xff]
    %v442 = vld [vmem:[%s9 + $0x10] sm:$0xff]
    %v443 = vld [vmem:[%s9 + $0x18] sm:$0xff]
    %v444 = vld [vmem:[%s9 + $0x20] sm:$0xff]
    %v445 = vld [vmem:[%s9 + $0x28] sm:$0xff]
    %v446 = vld [vmem:[%s9 + $0x30] sm:$0xff]
    %v447 = vld [vmem:[%s9 + $0x38] sm:$0xff]
    %v448 = vld [vmem:[%s9 + $0x40] sm:$0xff]
    %v449 = vld [vmem:[%s9 + $0x48] sm:$0xff]
    %v450 = vld [vmem:[%s9 + $0x50] sm:$0xff]
    %v451 = vld [vmem:[%s9 + $0x58] sm:$0xff]
    %v452 = vld [vmem:[%s9 + $0x60] sm:$0xff]
    %v453 = vld [vmem:[%s9 + $0x68] sm:$0xff]
    %v454 = vld [vmem:[%s9 + $0x70] sm:$0xff]
    %v455 = vld [vmem:[%s9 + $0x78] sm:$0xff]
    %v457 = vperm.slane %v50, 0
    %459 = vmatpush.msra.mxu0 %v455
    %460 = vmatpush.msra.mxu0 %v454
    %461 = vmatpush.msra.mxu0 %v453
    %462 = vmatpush.msra.mxu0 %v452
    %463 = vmatpush.msra.mxu0 %v451
    %464 = vmatpush.msra.mxu0 %v450
    %465 = vmatpush.msra.mxu0 %v449
    %466 = vmatpush.msra.mxu0 %v448
    %467 = vmatpush.msra.mxu0 %v447
    %468 = vmatpush.msra.mxu0 %v446
    %469 = vmatpush.msra.mxu0 %v445
    %470 = vmatpush.msra.mxu0 %v444
    %471 = vmatpush.msra.mxu0 %v443
    %472 = vmatpush.msra.mxu0 %v442
    %473 = vmatpush.msra.mxu0 %v441
    %474 = vmatpush.msra.mxu0 %v440
    %475 = vmatmul.f32.gmra.mxu0 %v438
    %v476 = vpop.f32.mrf.mxu0
    %v477 = vadd.f32 %v457, %v476
    %478 = vmatmul.f32.gmra.mxu0 %v439
    %v479 = vpop.f32.mrf.mxu0
    %v480 = vadd.f32 %v457, %v479
    %481 = vdwg.mxu0
    %v482 = vadd.f32 %v346, %v477
    %v483 = vadd.f32 %v347, %v480
    %484 = vst.msk [vmem:[#allocation2] sm:$0xff] %vm55, %v482
    %485 = vst.msk [vmem:[#allocation2 + $0x8] sm:$0xff] %vm55, %v483
    // Predicated region
    $region54: #{tpu_custom_call.1} parent=1 // pred_check
      _
    $region55: #{tpu_custom_call.1} parent=1 // pred_check_branch
      %487 = sbr.rel (0) target = $region57
    $region56: #{tpu_custom_call.1} parent=1 // pred_region
      %489 = vsyncadd [#allocation3], 0
      %s490 = sshll.u32 [#allocation2], 4
      %s491 = int_to_ptr.vmem [resolvable:$true] %s490
      %s492 = sshll.u32 %s13, 4
      %s493 = int_to_ptr.hbm [resolvable:$true] %s492
      %498 = dma.vmem_to_hbm [thread:$0]  %s491, 256, %s493, [#allocation3], 128, 128, 8
    $region57: #{tpu_custom_call.1} parent=1 // pred_fallthru
      _
    // Predicated region
    $region58: #{tpu_custom_call.1} parent=1 // pred_check
      _
    $region59: #{tpu_custom_call.1} parent=1 // pred_check_branch
      %500 = sbr.rel (0) target = $region61
    $region60: #{tpu_custom_call.1} parent=1 // pred_region
      %502 = dma.done [#allocation3], 256
    $region61: #{tpu_custom_call.1} parent=1 // pred_fallthru
      _
    %503 = vsyncpa [#allocation3], 1

</llo_original>
